<compile_context>
chip_gen: v5e
topology: v5e:2x2
jax: 0.10.0
libtpu: 0.0.40
codegen_flags: <defaults>
</compile_context>

<pallas_src>
import jax
import jax.numpy as jnp
from jax.experimental import pallas as pl
from jax.experimental.pallas import tpu as pltpu


def _shortcut_conv_kernel(x_ref, top_ref, bot_ref, w_ref, b_ref, o_ref):
    """One (batch, row-strip) tile per grid step.

    x_ref   : (1, TH, W*C)   lane-dense NHWC rows of the strip (also residual)
    top_ref : (1, 8,  W*C)   8-row block whose LAST row is the strip's top halo
    bot_ref : (1, 8,  W*C)   8-row block whose FIRST row is the strip's bottom halo
    w_ref   : (3*W*C, W*C)   structured conv matrix (dy on rows, dx + 3x3 folded in)
    b_ref   : (1, W*C)       bias broadcast over W (f32)
    o_ref   : (1, TH, W*C)   output strip
    """
    s = pl.program_id(1)
    ns = pl.num_programs(1)
    _, TH, WC = x_ref.shape

    xc = x_ref[0]                                        # (TH, WC) -- single x load
    zero_row = jnp.zeros((1, WC), dtype=xc.dtype)
    # Halo rows; zero at the image top/bottom edge (SAME padding).
    top = jnp.where(s > 0, top_ref[0, 7:8, :], zero_row)
    bot = jnp.where(s < ns - 1, bot_ref[0, 0:1, :], zero_row)

    # Extended strip with one halo row above/below.
    xe = jnp.concatenate([top, xc, bot], axis=0)         # (TH+2, WC)
    xd = xe.astype(w_ref.dtype)                          # MXU operand dtype

    # dy = -1, 0, +1 taps are row-shifted slices of xe; dx and the 3x3 weights
    # are folded into the structured (3*WC, WC) matrix, so the whole conv is
    # ONE lane-dense MXU contraction with f32 accumulation.
    lhs = jnp.concatenate([xd[0:TH], xd[1:TH + 1], xd[2:TH + 2]], axis=-1)  # (TH, 3*WC)
    conv = jnp.dot(lhs, w_ref[...], preferred_element_type=jnp.float32)     # (TH, WC)

    # Residual + bias + conv in one f32 epilogue; lane-dense store.
    out = xc.astype(jnp.float32) + conv + b_ref[...]
    o_ref[0] = out.astype(o_ref.dtype)


def _pick_strip_rows(H, WC, x_bytes, dot_bytes, budget):
    """Largest TH (multiple of 8, divisor of H, <=512) whose working set fits."""
    def est(th):
        stream = 2 * (th + 2 * 8) * WC * x_bytes      # in strip + halos, double-buffered
        out = 2 * th * WC * x_bytes                   # out strip, double-buffered
        live = (th + 2) * WC * (x_bytes + dot_bytes)  # xe (+ cast copy)
        lhs = 3 * th * WC * dot_bytes                 # lane-concat matmul LHS
        acc = th * WC * 4                             # f32 conv / epilogue
        return stream + out + live + lhs + acc

    best = 8
    th = 8
    while th <= min(H, 512):
        if H % th == 0 and est(th) <= budget:
            best = th
        th += 8
    return best


def shortcut_block(x_nchw, weight, bias, *, dot_dtype=jnp.bfloat16, strip_rows=None):
    """out = x + conv3x3(x; weight, bias).  NCHW in / NCHW out.

    dot_dtype: dtype of the MXU operands (default bf16 for v6e/v7x full-rate
    MXU; accumulation and the residual/bias epilogue always stay f32).
    """
    N, C, H, W = x_nchw.shape
    assert weight.shape == (C, C, 3, 3)
    assert bias.shape == (C,)
    assert H % 8 == 0 and H >= 8, "kernel assumes H is a multiple of 8"

    WC = W * C
    x_bytes = jnp.dtype(x_nchw.dtype).itemsize
    dot_bytes = jnp.dtype(dot_dtype).itemsize

    # ---- per-generation VMEM budget (v7x: 64 MiB/TC, v5e/v6e: 128 MiB) ----
    try:
        vmem_cap = int(pltpu.get_tpu_info().vmem_capacity_bytes)
    except Exception:
        vmem_cap = 64 * 1024 * 1024                   # conservative (v7x per-TC)
    vmem_limit = min(int(0.75 * vmem_cap), 100 * 1024 * 1024)

    rhs_bytes = 3 * WC * WC * dot_bytes
    assert rhs_bytes <= vmem_cap // 8, (
        "W*C too large for the structured-RHS kernel; use an im2col variant")

    if strip_rows is None:
        strip_rows = _pick_strip_rows(H, WC, x_bytes, dot_bytes,
                                      budget=vmem_cap // 4 - rhs_bytes)
    TH = int(strip_rows)
    assert TH % 8 == 0 and H % TH == 0, "strip_rows must be a multiple of 8 dividing H"
    n_strips = H // TH
    hb = TH // 8
    h8 = H // 8

    # ---- layout plumbing (free wrapper reshapes of contiguous NHWC) ----
    x_dense = jnp.transpose(x_nchw, (0, 2, 3, 1)).reshape(N, H, WC)

    # Structured conv matrix: rhs[ky*WC + w'*C + ci, w*C + co] =
    #   weight[co, ci, ky, kx] where kx = w' - w + 1 (and 0 outside |w'-w|<=1),
    # i.e. dx taps + 3x3 weights folded into one lane-dense (3*WC, WC) matmul RHS.
    wt = jnp.transpose(weight, (2, 3, 1, 0)).astype(jnp.float32)          # (ky,kx,ci,co)
    shift = jnp.stack([jnp.eye(W, k=1 - kx, dtype=jnp.float32)
                       for kx in range(3)])                               # (kx, w', w)
    rhs = jnp.einsum("kxco,xpw->kpcwo", wt, shift).reshape(3 * WC, WC)
    rhs = rhs.astype(dot_dtype)
    b_dense = jnp.tile(bias.astype(jnp.float32), W).reshape(1, WC)

    out_dense = pl.pallas_call(
        _shortcut_conv_kernel,
        out_shape=jax.ShapeDtypeStruct((N, H, WC), x_nchw.dtype),
        grid_spec=pltpu.PrefetchScalarGridSpec(
            num_scalar_prefetch=0,
            grid=(N, n_strips),
            in_specs=[
                # strip of the image (also the residual)
                pl.BlockSpec((1, TH, WC), lambda n, s: (n, s, 0)),
                # 8-row sublane-aligned halo blocks (last row / first row used)
                pl.BlockSpec((1, 8, WC),
                             lambda n, s: (n, jnp.maximum(s * hb - 1, 0), 0)),
                pl.BlockSpec((1, 8, WC),
                             lambda n, s: (n, jnp.minimum((s + 1) * hb, h8 - 1), 0)),
                # structured conv matrix + bias: resident across the grid
                pl.BlockSpec((3 * WC, WC), lambda n, s: (0, 0)),
                pl.BlockSpec((1, WC), lambda n, s: (0, 0)),
            ],
            out_specs=pl.BlockSpec((1, TH, WC), lambda n, s: (n, s, 0)),
        ),
        compiler_params=pltpu.CompilerParams(
            dimension_semantics=("parallel", "parallel"),
            vmem_limit_bytes=vmem_limit,
        ),
    )(x_dense, x_dense, x_dense, rhs, b_dense)

    return jnp.transpose(out_dense.reshape(N, H, W, C), (0, 3, 1, 2))


def _reference(x_nchw, weight, bias):
    """Plain-JAX reference: x + conv3x3(x) + b, NCHW."""
    y = jax.lax.conv_general_dilated(
        x_nchw.astype(jnp.float32), weight.astype(jnp.float32),
        window_strides=(1, 1), padding="SAME",
        dimension_numbers=("NCHW", "OIHW", "NCHW"),
        precision=jax.lax.Precision.HIGHEST)
    y = y + bias.reshape(1, -1, 1, 1)
    return (x_nchw.astype(jnp.float32) + y).astype(x_nchw.dtype)


if __name__ == "__main__":
    key = jax.random.PRNGKey(0)
    kx_, kw_, kb_ = jax.random.split(key, 3)

    N, C, H, W = 2, 4, 16, 16
    x = jax.random.normal(kx_, (N, C, H, W), dtype=jnp.float32)
    weight = 0.1 * jax.random.normal(kw_, (C, C, 3, 3), dtype=jnp.float32)
    bias = 0.05 * jax.random.normal(kb_, (C,), dtype=jnp.float32)

    ref = _reference(x, weight, bias)

    # f32 MXU operands + forced 2-strip tiling: exercises the halo path tightly.
    out_f32 = jax.block_until_ready(
        shortcut_block(x, weight, bias, dot_dtype=jnp.float32, strip_rows=8))
    assert out_f32.shape == (N, C, H, W)
    assert jnp.allclose(out_f32, ref, atol=5e-3, rtol=5e-3), "f32 path mismatch"

    # Default path: bf16 MXU operands (f32 accumulation/epilogue), auto strip size.
    out_bf16 = jax.block_until_ready(shortcut_block(x, weight, bias))
    assert out_bf16.shape == (N, C, H, W)
    assert jnp.allclose(out_bf16, ref, atol=5e-2, rtol=5e-2), "bf16 path mismatch"

    print("KERNEL_OK")
</pallas_src>

<mosaic_0001>
module attributes {stable_mosaic.version = 11 : i64} {
  func.func @_shortcut_conv_kernel(%arg0: i32, %arg1: i32, %arg2: memref<1x8x64xf32, #tpu.memory_space<vmem>>, %arg3: memref<1x8x64xf32, #tpu.memory_space<vmem>>, %arg4: memref<1x8x64xf32, #tpu.memory_space<vmem>>, %arg5: memref<192x64xf32, #tpu.memory_space<vmem>>, %arg6: memref<1x64xf32, #tpu.memory_space<vmem>>, %arg7: memref<1x8x64xf32, #tpu.memory_space<vmem>>) attributes {dimension_semantics = [#tpu.dimension_semantics<parallel>, #tpu.dimension_semantics<parallel>], iteration_bounds = array<i64: 2, 2>, scalar_prefetch = 0 : i64, scratch_operands = 0 : i64, tpu.core_type = #tpu.core_type<tc>, window_params = [{transform_indices = @transform_0, window_bounds = array<i64: 1, 8, 64>}, {transform_indices = @transform_1, window_bounds = array<i64: 1, 8, 64>}, {transform_indices = @transform_2, window_bounds = array<i64: 1, 8, 64>}, {pipeline_mode = #tpu.pipeline_mode<synchronous>, transform_indices = @transform_3, window_bounds = array<i64: 192, 64>}, {pipeline_mode = #tpu.pipeline_mode<synchronous>, transform_indices = @transform_4, window_bounds = array<i64: 1, 64>}, {transform_indices = @transform_5, window_bounds = array<i64: 1, 8, 64>}]} {
    %c0 = arith.constant 0 : index
    %c0_0 = arith.constant 0 : index
    %c0_1 = arith.constant 0 : index
    %0 = vector.load %arg2[%c0, %c0_0, %c0_1] : memref<1x8x64xf32, #tpu.memory_space<vmem>>, vector<1x8x64xf32>
    %1 = vector.shape_cast %0 : vector<1x8x64xf32> to vector<8x64xf32>
    %cst = arith.constant 0.000000e+00 : f32
    %2 = vector.broadcast %cst : f32 to vector<1x64xf32>
    %c0_i32 = arith.constant 0 : i32
    %3 = arith.cmpi sgt, %arg1, %c0_i32 : i32
    %c0_2 = arith.constant 0 : index
    %c7 = arith.constant 7 : index
    %c0_3 = arith.constant 0 : index
    %4 = vector.load %arg3[%c0_2, %c7, %c0_3] : memref<1x8x64xf32, #tpu.memory_space<vmem>>, vector<1x1x64xf32>
    %5 = vector.shape_cast %4 : vector<1x1x64xf32> to vector<1x64xf32>
    %6 = arith.select %3, %5, %2 : vector<1x64xf32>
    %c1_i32 = arith.constant 1 : i32
    %7 = arith.cmpi slt, %arg1, %c1_i32 : i32
    %c0_4 = arith.constant 0 : index
    %c0_5 = arith.constant 0 : index
    %c0_6 = arith.constant 0 : index
    %8 = vector.load %arg4[%c0_4, %c0_5, %c0_6] : memref<1x8x64xf32, #tpu.memory_space<vmem>>, vector<1x1x64xf32>
    %9 = vector.shape_cast %8 : vector<1x1x64xf32> to vector<1x64xf32>
    %10 = arith.select %7, %9, %2 : vector<1x64xf32>
    %11 = tpu.concatenate %6, %1, %10 in 0 : vector<1x64xf32>, vector<8x64xf32>, vector<1x64xf32> -> vector<10x64xf32>
    %12 = vector.extract_strided_slice %11 {offsets = [0, 0], sizes = [8, 64], strides = [1, 1]} : vector<10x64xf32> to vector<8x64xf32>
    %13 = vector.extract_strided_slice %11 {offsets = [1, 0], sizes = [8, 64], strides = [1, 1]} : vector<10x64xf32> to vector<8x64xf32>
    %14 = vector.extract_strided_slice %11 {offsets = [2, 0], sizes = [8, 64], strides = [1, 1]} : vector<10x64xf32> to vector<8x64xf32>
    %15 = tpu.concatenate %12, %13, %14 in 1 : vector<8x64xf32>, vector<8x64xf32>, vector<8x64xf32> -> vector<8x192xf32>
    %c0_7 = arith.constant 0 : index
    %c0_8 = arith.constant 0 : index
    %16 = vector.load %arg5[%c0_7, %c0_8] : memref<192x64xf32, #tpu.memory_space<vmem>>, vector<192x64xf32>
    %cst_9 = arith.constant dense<0.000000e+00> : vector<8x64xf32>
    %17 = tpu.matmul %15, %16, %cst_9 {dimension_numbers = #tpu.dot_dimension_numbers<[1], [0], [0], [1], [0, 0, 1, 1], [], []>} : vector<8x192xf32>, vector<192x64xf32>, vector<8x64xf32> -> vector<8x64xf32>
    %18 = arith.addf %1, %17 : vector<8x64xf32>
    %c0_10 = arith.constant 0 : index
    %c0_11 = arith.constant 0 : index
    %19 = vector.load %arg6[%c0_10, %c0_11] : memref<1x64xf32, #tpu.memory_space<vmem>>, vector<1x64xf32>
    %20 = vector.broadcast %19 : vector<1x64xf32> to vector<8x64xf32>
    %21 = arith.addf %18, %20 : vector<8x64xf32>
    %c0_12 = arith.constant 0 : index
    %c0_13 = arith.constant 0 : index
    %c0_14 = arith.constant 0 : index
    %22 = vector.load %arg7[%c0_12, %c0_13, %c0_14] : memref<1x8x64xf32, #tpu.memory_space<vmem>>, vector<1x8x64xf32>
    %23 = vector.shape_cast %22 : vector<1x8x64xf32> to vector<8x64xf32>
    %24 = vector.shape_cast %21 : vector<8x64xf32> to vector<1x8x64xf32>
    tpu.vector_store %arg7[%c0_12, %c0_13, %c0_14], %24 {strides = array<i32>} : memref<1x8x64xf32, #tpu.memory_space<vmem>>, vector<1x8x64xf32>,
    return
  }
  func.func @transform_0(%arg0: i32, %arg1: i32) -> (i32, i32, i32) {
    %c0_i32 = arith.constant 0 : i32
    %c0_i32_0 = arith.constant 0 : i32
    return %arg0, %arg1, %c0_i32 : i32, i32, i32
  }
  func.func @transform_1(%arg0: i32, %arg1: i32) -> (i32, i32, i32) {
    %c1_i32 = arith.constant 1 : i32
    %0 = arith.muli %arg1, %c1_i32 : i32
    %c1_i32_0 = arith.constant 1 : i32
    %1 = arith.subi %0, %c1_i32_0 : i32
    %c0_i32 = arith.constant 0 : i32
    %2 = arith.maxsi %1, %c0_i32 : i32
    %c0_i32_1 = arith.constant 0 : i32
    %c0_i32_2 = arith.constant 0 : i32
    return %arg0, %2, %c0_i32_1 : i32, i32, i32
  }
  func.func @transform_2(%arg0: i32, %arg1: i32) -> (i32, i32, i32) {
    %c1_i32 = arith.constant 1 : i32
    %0 = arith.addi %arg1, %c1_i32 : i32
    %c1_i32_0 = arith.constant 1 : i32
    %1 = arith.muli %0, %c1_i32_0 : i32
    %c1_i32_1 = arith.constant 1 : i32
    %2 = arith.minsi %1, %c1_i32_1 : i32
    %c0_i32 = arith.constant 0 : i32
    %c0_i32_2 = arith.constant 0 : i32
    return %arg0, %2, %c0_i32 : i32, i32, i32
  }
  func.func @transform_3(%arg0: i32, %arg1: i32) -> (i32, i32) {
    %c0_i32 = arith.constant 0 : i32
    %c0_i32_0 = arith.constant 0 : i32
    %c0_i32_1 = arith.constant 0 : i32
    return %c0_i32, %c0_i32_0 : i32, i32
  }
  func.func @transform_4(%arg0: i32, %arg1: i32) -> (i32, i32) {
    %c0_i32 = arith.constant 0 : i32
    %c0_i32_0 = arith.constant 0 : i32
    %c0_i32_1 = arith.constant 0 : i32
    return %c0_i32, %c0_i32_0 : i32, i32
  }
  func.func @transform_5(%arg0: i32, %arg1: i32) -> (i32, i32, i32) {
    %c0_i32 = arith.constant 0 : i32
    %c0_i32_0 = arith.constant 0 : i32
    return %arg0, %arg1, %c0_i32 : i32, i32, i32
  }
}

</mosaic_0001>

<llo_original>
// kernel: tpu_custom_call.1
$region0: #{tpu_custom_call.1}
  #allocation0 [shape = 'u32[]', space=smem, size = 0x4, offset = 0x4, fixed_abs, tag = 'smem constant byte address 0x4 - core index']
  #allocation1 [shape = 'u32[72,128]{1,0:T(1,128)}', space=vmem, size = 0x9000, scoped, tag = 'internal scratch']
  %s0 = inlined_call_operand.vmem [shape: f32[2,16,64], index: 0, kind: input, shape index: {}]
  %s1 = inlined_call_operand.vmem [shape: f32[2,16,64], index: 1, kind: input, shape index: {}]
  %s2 = inlined_call_operand.vmem [shape: f32[2,16,64], index: 2, kind: input, shape index: {}]
  %s3 = inlined_call_operand.vmem [shape: f32[192,64], index: 3, kind: input, shape index: {}]
  %s4 = inlined_call_operand.vmem [shape: f32[1,64], index: 4, kind: input, shape index: {}]
  %s5 = inlined_call_operand.hbm [shape: f32[2,16,64], index: 5, kind: output, shape index: {}]
  %s6 = sld [smem:[#allocation0]]
  $region53: #{tpu_custom_call.1} parent=0
    _
  %s8 = ssub.s32 1, %s6
  %s9 = scalar_select 0, %s8, %s6
  $region1: #{tpu_custom_call.1} parent=0
    #allocation2 [shape = 'u8[8192]{0}', space=vmem, size = 0x2000, scoped, tag = 'output window, operand 0']
    #allocation3 [shape = 's32[2]{0}', space=sflag, size = 0x8, scoped, tag = 'scoped memory for tpu_custom_call.1']
    %10 = vsyncpa [#allocation3], 0
    %s11 = scalar_lea.sflag [#allocation3], 1
    %12 = vsyncpa %s11, 0
    loop: start=0, step=1, limit=6
    $region2: #{tpu_custom_call.1} parent=1 // loop_pre_header
      _
    $region3: #{tpu_custom_call.1} parent=1 // loop_header
      %s14 = sphi 0, %s18
      %p15 = scmp.ge.s32.totalorder %s14, 6
      %s21 = sphi 0, %s33
      %s22 = sphi 0, %s29
      %s23 = sphi 0, %s21
      %s24 = sphi 0, %s22
      %s25 = sphi 0, %s23
      %s26 = sphi 0, %s24
      %s38 = sphi 0, %s40
      %s41 = sphi 0, %s38
      %s42 = sphi 0, %s41
      %s58 = sphi 0, %s42
      %s72 = sphi 0, %s74
      %s75 = sphi 0, %s72
      %s76 = sphi 0, %s75
      %s92 = sphi 0, %s76
      %s106 = sphi 0, %s108
      %s109 = sphi 0, %s106
      %s110 = sphi 0, %s109
      %s126 = sphi 0, %s110
      %s130 = sphi 0, %s130
      %s132 = sphi 0, %s130
      %s133 = sphi 0, %s132
      %s147 = sphi 0, %s133
      %s151 = sphi 0, %s151
      %s153 = sphi 0, %s151
      %s154 = sphi 0, %s153
      %s168 = sphi 0, %s154
      %s176 = sphi 0, %s178
      %s179 = sphi 0, %s176
      %s180 = sphi 0, %s179
      %s196 = sphi 0, %s180
    $region4: #{tpu_custom_call.1} parent=1 // loop_header_branch
      %17 = sbr.rel (%p15) target = $region8
    $region5: #{tpu_custom_call.1} parent=1 // loop_body
      %s19 = ssub.s32 %s14, 1
      %s20 = ssub.s32 %s14, 2
      %s27 = sadd.s32 1, %s22
      %p28 = scmp.ge.s32.totalorder %s27, 2
      %s29 = scalar_select %p28, 0, %s27
      %s30 = sadd.s32 1, %s21
      %s31 = scalar_select %p28, %s30, %s21
      %p32 = scmp.ge.s32.totalorder %s31, 2
      %s33 = scalar_select %p32, 0, %s31
      %s34 = ssub.s32 %s21, %s33
      %s35 = ssub.s32 %s22, %s29
      %s36 = sor.u32 %s34, %s35
      %p37 = scmp.eq.s32.totalorder %s36, 0
      %s39 = sadd.s32 %s38, 1
      %s40 = scalar_select %p37, %s38, %s39
      %p43 = pneg %p37
      %p44 = scmp.eq.s32.totalorder %s14, 3
      %p45 = por %p43, %p44
      %p46 = scmp.ne.s32.totalorder %s38, %s41
      %p47 = scmp.eq.s32.totalorder %s14, 0
      %p48 = por %p46, %p47
      %p49 = scmp.ne.s32.totalorder %s38, %s41
      %p50 = scmp.eq.s32.totalorder %s19, 3
      %p51 = por %p49, %p50
      %p52 = scmp.ne.s32.totalorder %s41, %s42
      %p53 = scmp.eq.s32.totalorder %s19, 0
      %p54 = por %p52, %p53
      %p55 = scmp.ne.s32.totalorder %s41, %s42
      %p56 = scmp.eq.s32.totalorder %s20, 3
      %p57 = por %p55, %p56
      %p59 = scmp.ne.s32.totalorder %s42, %s58
      %p60 = scmp.eq.s32.totalorder %s20, 0
      %p61 = por %p59, %p60
      %s62 = ssub.s32 %s22, 1
      %p63 = scmp.gt.s32.totalorder %s62, 0
      %s64 = scalar_select %p63, %s62, 0
      %s65 = ssub.s32 %s29, 1
      %p66 = scmp.gt.s32.totalorder %s65, 0
      %s67 = scalar_select %p66, %s65, 0
      %s68 = ssub.s32 %s21, %s33
      %s69 = ssub.s32 %s64, %s67
      %s70 = sor.u32 %s68, %s69
      %p71 = scmp.eq.s32.totalorder %s70, 0
      %s73 = sadd.s32 %s72, 1
      %s74 = scalar_select %p71, %s72, %s73
      %p77 = pneg %p71
      %p78 = scmp.eq.s32.totalorder %s14, 3
      %p79 = por %p77, %p78
      %p80 = scmp.ne.s32.totalorder %s72, %s75
      %p81 = scmp.eq.s32.totalorder %s14, 0
      %p82 = por %p80, %p81
      %p83 = scmp.ne.s32.totalorder %s72, %s75
      %p84 = scmp.eq.s32.totalorder %s19, 3
      %p85 = por %p83, %p84
      %p86 = scmp.ne.s32.totalorder %s75, %s76
      %p87 = scmp.eq.s32.totalorder %s19, 0
      %p88 = por %p86, %p87
      %p89 = scmp.ne.s32.totalorder %s75, %s76
      %p90 = scmp.eq.s32.totalorder %s20, 3
      %p91 = por %p89, %p90
      %p93 = scmp.ne.s32.totalorder %s76, %s92
      %p94 = scmp.eq.s32.totalorder %s20, 0
      %p95 = por %p93, %p94
      %s96 = sadd.s32 %s22, 1
      %p97 = scmp.lt.s32.totalorder %s96, 1
      %s98 = scalar_select %p97, %s96, 1
      %s99 = sadd.s32 %s29, 1
      %p100 = scmp.lt.s32.totalorder %s99, 1
      %s101 = scalar_select %p100, %s99, 1
      %s102 = ssub.s32 %s21, %s33
      %s103 = ssub.s32 %s98, %s101
      %s104 = sor.u32 %s102, %s103
      %p105 = scmp.eq.s32.totalorder %s104, 0
      %s107 = sadd.s32 %s106, 1
      %s108 = scalar_select %p105, %s106, %s107
      %p111 = pneg %p105
      %p112 = scmp.eq.s32.totalorder %s14, 3
      %p113 = por %p111, %p112
      %p114 = scmp.ne.s32.totalorder %s106, %s109
      %p115 = scmp.eq.s32.totalorder %s14, 0
      %p116 = por %p114, %p115
      %p117 = scmp.ne.s32.totalorder %s106, %s109
      %p118 = scmp.eq.s32.totalorder %s19, 3
      %p119 = por %p117, %p118
      %p120 = scmp.ne.s32.totalorder %s109, %s110
      %p121 = scmp.eq.s32.totalorder %s19, 0
      %p122 = por %p120, %p121
      %p123 = scmp.ne.s32.totalorder %s109, %s110
      %p124 = scmp.eq.s32.totalorder %s20, 3
      %p125 = por %p123, %p124
      %p127 = scmp.ne.s32.totalorder %s110, %s126
      %p128 = scmp.eq.s32.totalorder %s20, 0
      %p129 = por %p127, %p128
      %s131 = sadd.s32 %s130, 1
      %p134 = scmp.eq.s32.totalorder %s14, 3
      %p135 = scmp.ne.s32.totalorder %s130, %s132
      %p136 = scmp.eq.s32.totalorder %s14, 0
      %p137 = por %p135, %p136
      %p138 = scmp.ne.s32.totalorder %s130, %s132
      %p139 = scmp.eq.s32.totalorder %s19, 3
      %p140 = por %p138, %p139
      %p141 = scmp.ne.s32.totalorder %s132, %s133
      %p142 = scmp.eq.s32.totalorder %s19, 0
      %p143 = por %p141, %p142
      %p144 = scmp.ne.s32.totalorder %s132, %s133
      %p145 = scmp.eq.s32.totalorder %s20, 3
      %p146 = por %p144, %p145
      %p148 = scmp.ne.s32.totalorder %s133, %s147
      %p149 = scmp.eq.s32.totalorder %s20, 0
      %p150 = por %p148, %p149
      %s152 = sadd.s32 %s151, 1
      %p155 = scmp.eq.s32.totalorder %s14, 3
      %p156 = scmp.ne.s32.totalorder %s151, %s153
      %p157 = scmp.eq.s32.totalorder %s14, 0
      %p158 = por %p156, %p157
      %p159 = scmp.ne.s32.totalorder %s151, %s153
      %p160 = scmp.eq.s32.totalorder %s19, 3
      %p161 = por %p159, %p160
      %p162 = scmp.ne.s32.totalorder %s153, %s154
      %p163 = scmp.eq.s32.totalorder %s19, 0
      %p164 = por %p162, %p163
      %p165 = scmp.ne.s32.totalorder %s153, %s154
      %p166 = scmp.eq.s32.totalorder %s20, 3
      %p167 = por %p165, %p166
      %p169 = scmp.ne.s32.totalorder %s154, %s168
      %p170 = scmp.eq.s32.totalorder %s20, 0
      %p171 = por %p169, %p170
      %s172 = ssub.s32 %s21, %s33
      %s173 = ssub.s32 %s22, %s29
      %s174 = sor.u32 %s172, %s173
      %p175 = scmp.eq.s32.totalorder %s174, 0
      %s177 = sadd.s32 %s176, 1
      %s178 = scalar_select %p175, %s176, %s177
      %p181 = pneg %p175
      %p182 = scmp.eq.s32.totalorder %s14, 3
      %p183 = por %p181, %p182
      %p184 = scmp.ne.s32.totalorder %s176, %s179
      %p185 = scmp.eq.s32.totalorder %s14, 0
      %p186 = por %p184, %p185
      %p187 = scmp.ne.s32.totalorder %s176, %s179
      %p188 = scmp.eq.s32.totalorder %s19, 3
      %p189 = por %p187, %p188
      %p190 = scmp.ne.s32.totalorder %s179, %s180
      %p191 = scmp.eq.s32.totalorder %s19, 0
      %p192 = por %p190, %p191
      %p193 = scmp.ne.s32.totalorder %s179, %s180
      %p194 = scmp.eq.s32.totalorder %s20, 3
      %p195 = por %p193, %p194
      %p197 = scmp.ne.s32.totalorder %s180, %s196
      %p198 = scmp.eq.s32.totalorder %s20, 0
      %p199 = por %p197, %p198
      %p200 = scmp.le.s32.totalorder 1, %s14
      %p201 = scmp.lt.s32.totalorder %s14, 5
      %p202 = pnand %p200, %p201
      %p203 = pneg %p202
      // Predicated region
      $region9: #{tpu_custom_call.1} parent=5 // pred_check
        _
      $region10: #{tpu_custom_call.1} parent=5 // pred_check_branch
        %205 = sbr.rel (%p202) target = $region12
      $region11: #{tpu_custom_call.1} parent=5 // pred_region
        %s206 = ssub.s32 %s14, 1
        // Predicated region
        $region13: #{tpu_custom_call.1} parent=11 // pred_check
          %p207 = pneg %p143
        $region14: #{tpu_custom_call.1} parent=11 // pred_check_branch
          %209 = sbr.rel (%p207) target = $region16
        $region15: #{tpu_custom_call.1} parent=11 // pred_region
          _
        $region16: #{tpu_custom_call.1} parent=11 // pred_fallthru
          _
        // Predicated region
        $region17: #{tpu_custom_call.1} parent=11 // pred_check
          %p210 = pneg %p164
        $region18: #{tpu_custom_call.1} parent=11 // pred_check_branch
          %212 = sbr.rel (%p210) target = $region20
        $region19: #{tpu_custom_call.1} parent=11 // pred_region
          _
        $region20: #{tpu_custom_call.1} parent=11 // pred_fallthru
          _
      $region12: #{tpu_custom_call.1} parent=5 // pred_fallthru
        _
      %p213 = scmp.lt.s32.totalorder %s14, 4
      // Predicated region
      $region21: #{tpu_custom_call.1} parent=5 // pred_check
        %p214 = pneg %p213
      $region22: #{tpu_custom_call.1} parent=5 // pred_check_branch
        %216 = sbr.rel (%p214) target = $region24
      $region23: #{tpu_custom_call.1} parent=5 // pred_region
        // Predicated region
        $region25: #{tpu_custom_call.1} parent=23 // pred_check
          %p217 = pneg %p48
        $region26: #{tpu_custom_call.1} parent=23 // pred_check_branch
          %219 = sbr.rel (%p217) target = $region28
        $region27: #{tpu_custom_call.1} parent=23 // pred_region
          %p220 = scmp.lt.s32.totalorder %s21, 1
          %s221 = scalar_select %p220, %s21, 1
          %p222 = scmp.lt.s32.totalorder %s22, 1
          %s223 = scalar_select %p222, %s22, 1
          %s224 = smul.addr %s221, 2
          %s225 = sadd.s32 %s223, %s224
          %s226 = smul.addr %s225, 8
          %s227 = scalar_lea.vmem %s0, %s226
        $region28: #{tpu_custom_call.1} parent=23 // pred_fallthru
          _
        // Predicated region
        $region29: #{tpu_custom_call.1} parent=23 // pred_check
          %p228 = pneg %p82
        $region30: #{tpu_custom_call.1} parent=23 // pred_check_branch
          %230 = sbr.rel (%p228) target = $region32
        $region31: #{tpu_custom_call.1} parent=23 // pred_region
          %s231 = ssub.s32 %s22, 1
          %p232 = scmp.gt.s32.totalorder %s231, 0
          %s233 = scalar_select %p232, %s231, 0
          %p234 = scmp.lt.s32.totalorder %s21, 1
          %s235 = scalar_select %p234, %s21, 1
          %p236 = scmp.lt.s32.totalorder %s233, 1
          %s237 = scalar_select %p236, %s233, 1
          %s238 = smul.addr %s235, 2
          %s239 = sadd.s32 %s237, %s238
          %s240 = smul.addr %s239, 8
          %s241 = scalar_lea.vmem %s1, %s240
          %s242 = ssub.s32 %s22, 1
          %p243 = scmp.gt.s32.totalorder %s242, 0
          %s244 = scalar_select %p243, %s242, 0
        $region32: #{tpu_custom_call.1} parent=23 // pred_fallthru
          _
        // Predicated region
        $region33: #{tpu_custom_call.1} parent=23 // pred_check
          %p245 = pneg %p116
        $region34: #{tpu_custom_call.1} parent=23 // pred_check_branch
          %247 = sbr.rel (%p245) target = $region36
        $region35: #{tpu_custom_call.1} parent=23 // pred_region
          %s248 = sadd.s32 %s22, 1
          %p249 = scmp.lt.s32.totalorder %s248, 1
          %s250 = scalar_select %p249, %s248, 1
          %p251 = scmp.lt.s32.totalorder %s21, 1
          %s252 = scalar_select %p251, %s21, 1
          %p253 = scmp.lt.s32.totalorder %s250, 1
          %s254 = scalar_select %p253, %s250, 1
          %s255 = smul.addr %s252, 2
          %s256 = sadd.s32 %s254, %s255
          %s257 = smul.addr %s256, 8
          %s258 = scalar_lea.vmem %s2, %s257
          %s259 = sadd.s32 %s22, 1
          %p260 = scmp.lt.s32.totalorder %s259, 1
          %s261 = scalar_select %p260, %s259, 1
        $region36: #{tpu_custom_call.1} parent=23 // pred_fallthru
          _
      $region24: #{tpu_custom_call.1} parent=5 // pred_fallthru
        _
      %p262 = scmp.le.s32.totalorder 1, %s14
      %p263 = scmp.lt.s32.totalorder %s14, 5
      %p264 = pnand %p262, %p263
      %p265 = pneg %p264
      // Predicated region
      $region37: #{tpu_custom_call.1} parent=5 // pred_check
        _
      $region38: #{tpu_custom_call.1} parent=5 // pred_check_branch
        %267 = sbr.rel (%p264) target = $region40
      $region39: #{tpu_custom_call.1} parent=5 // pred_region
        %s268 = ssub.s32 %s14, 1
        %p269 = scmp.lt.s32.totalorder %s23, 1
        %s270 = scalar_select %p269, %s23, 1
        %p271 = scmp.lt.s32.totalorder %s24, 1
        %s272 = scalar_select %p271, %s24, 1
        %s273 = smul.addr %s270, 2
        %s274 = sadd.s32 %s272, %s273
        %s275 = smul.addr %s274, 8
        %s276 = scalar_lea.vmem %s0, %s275
        %p277 = pneg %p54
        %p278 = pneg %p51
        %s279 = ssub.s32 %s24, 1
        %p280 = scmp.gt.s32.totalorder %s279, 0
        %s281 = scalar_select %p280, %s279, 0
        %p282 = scmp.lt.s32.totalorder %s23, 1
        %s283 = scalar_select %p282, %s23, 1
        %p284 = scmp.lt.s32.totalorder %s281, 1
        %s285 = scalar_select %p284, %s281, 1
        %s286 = smul.addr %s283, 2
        %s287 = sadd.s32 %s285, %s286
        %s288 = smul.addr %s287, 8
        %s289 = scalar_lea.vmem %s1, %s288
        %p290 = pneg %p88
        %p291 = pneg %p85
        %s292 = sadd.s32 %s24, 1
        %p293 = scmp.lt.s32.totalorder %s292, 1
        %s294 = scalar_select %p293, %s292, 1
        %p295 = scmp.lt.s32.totalorder %s23, 1
        %s296 = scalar_select %p295, %s23, 1
        %p297 = scmp.lt.s32.totalorder %s294, 1
        %s298 = scalar_select %p297, %s294, 1
        %s299 = smul.addr %s296, 2
        %s300 = sadd.s32 %s298, %s299
        %s301 = smul.addr %s300, 8
        %s302 = scalar_lea.vmem %s2, %s301
        %p303 = pneg %p122
        %p304 = pneg %p119
        %p305 = pneg %p143
        %p306 = pneg %p140
        %p307 = pneg %p164
        %p308 = pneg %p161
        %p309 = pneg %p192
        %p310 = pneg %p189
        %s311 = sand.u32 %s179, 1
        %s312 = scalar_lea.sflag [#allocation3], %s311
        %s313 = sand.u32 %s179, 1
        %s314 = smul.addr %s313, 8
        %s315 = scalar_lea.vmem [#allocation2], %s314
        %p316 = scmp.lt.s32.totalorder %s23, 1
        %s317 = scalar_select %p316, %s23, 1
        %p318 = scmp.lt.s32.totalorder %s24, 1
        %s319 = scalar_select %p318, %s24, 1
        %s320 = smul.addr %s317, 2
        %s321 = sadd.s32 %s319, %s320
        %s322 = smul.addr %s321, 8
        %s323 = scalar_lea.vmem %s0, %s322
        %s324 = ssub.s32 %s24, 1
        %p325 = scmp.gt.s32.totalorder %s324, 0
        %s326 = scalar_select %p325, %s324, 0
        %p327 = scmp.lt.s32.totalorder %s23, 1
        %s328 = scalar_select %p327, %s23, 1
        %p329 = scmp.lt.s32.totalorder %s326, 1
        %s330 = scalar_select %p329, %s326, 1
        %s331 = smul.addr %s328, 2
        %s332 = sadd.s32 %s330, %s331
        %s333 = smul.addr %s332, 8
        %s334 = scalar_lea.vmem %s1, %s333
        %s335 = ssub.s32 %s24, 1
        %p336 = scmp.gt.s32.totalorder %s335, 0
        %s337 = scalar_select %p336, %s335, 0
        %s338 = sadd.s32 %s24, 1
        %p339 = scmp.lt.s32.totalorder %s338, 1
        %s340 = scalar_select %p339, %s338, 1
        %p341 = scmp.lt.s32.totalorder %s23, 1
        %s342 = scalar_select %p341, %s23, 1
        %p343 = scmp.lt.s32.totalorder %s340, 1
        %s344 = scalar_select %p343, %s340, 1
        %s345 = smul.addr %s342, 2
        %s346 = sadd.s32 %s344, %s345
        %s347 = smul.addr %s346, 8
        %s348 = scalar_lea.vmem %s2, %s347
        %s349 = sadd.s32 %s24, 1
        %p350 = scmp.lt.s32.totalorder %s349, 1
        %s351 = scalar_select %p350, %s349, 1
        %v352 = vld [vmem:[%s323] sm:$0xff]
        %p353 = scmp.gt.s32.totalorder %s24, 0
        %v354 = vld [vmem:[%s334 + $0x7] sm:$0x1]
        %s355 = scalar_select %p353, 1, 0
        %v356 = vstv %s355
        %vm357 = vcmp.eq.s32.totalorder %v356, 1
        %v358 = vsel %vm357, %v354, 0.0
        %p359 = scmp.lt.s32.totalorder %s24, 1
        %v360 = vld [vmem:[%s348] sm:$0x1]
        %s361 = scalar_select %p359, 1, 0
        %v362 = vstv %s361
        %vm363 = vcmp.eq.s32.totalorder %v362, 1
        %v364 = vsel %vm363, %v360, 0.0
        %v366 = vrot.slane %v352, 7
        %v369 = vrot.slane %v364, 7
        %vm371 = vcmask 1040384
        %v372 = vsel %vm371, %v358, %v366
        %v373 = vsel %vm371, %v366, %v369
        %vm376 = vcmask 1046528
        %v377 = vrot.slane %v372, 1
        %v378 = vrot.slane %v373, 1
        %v379 = vsel %vm376, %v377, %v378
        %380 = vrot.lane.b32.xlu0 %v379, 64
        %v381 = vpop.permute.xlu0 %380
        %vm383 = vcmask 1045504
        %v384 = vrot.slane %v372, 2
        %v385 = vrot.slane %v373, 2
        %v386 = vsel %vm383, %v384, %v385
        %vm387 = vcmask 523264
        %v388 = vsel %vm387, %v372, %v381
        %v389 = vld [vmem:[%s3] sm:$0xff]
        %v390 = vld [vmem:[%s3 + $0x8] sm:$0xff]
        %v391 = vld [vmem:[%s3 + $0x10] sm:$0xff]
        %v392 = vld [vmem:[%s3 + $0x18] sm:$0xff]
        %v393 = vld [vmem:[%s3 + $0x20] sm:$0xff]
        %v394 = vld [vmem:[%s3 + $0x28] sm:$0xff]
        %v395 = vld [vmem:[%s3 + $0x30] sm:$0xff]
        %v396 = vld [vmem:[%s3 + $0x38] sm:$0xff]
        %v397 = vld [vmem:[%s3 + $0x40] sm:$0xff]
        %v398 = vld [vmem:[%s3 + $0x48] sm:$0xff]
        %v399 = vld [vmem:[%s3 + $0x50] sm:$0xff]
        %v400 = vld [vmem:[%s3 + $0x58] sm:$0xff]
        %v401 = vld [vmem:[%s3 + $0x60] sm:$0xff]
        %v402 = vld [vmem:[%s3 + $0x68] sm:$0xff]
        %v403 = vld [vmem:[%s3 + $0x70] sm:$0xff]
        %v404 = vld [vmem:[%s3 + $0x78] sm:$0xff]
        %v405 = vld [vmem:[%s3 + $0x80] sm:$0xff]
        %v406 = vld [vmem:[%s3 + $0x88] sm:$0xff]
        %v407 = vld [vmem:[%s3 + $0x90] sm:$0xff]
        %v408 = vld [vmem:[%s3 + $0x98] sm:$0xff]
        %v409 = vld [vmem:[%s3 + $0xa0] sm:$0xff]
        %v410 = vld [vmem:[%s3 + $0xa8] sm:$0xff]
        %v411 = vld [vmem:[%s3 + $0xb0] sm:$0xff]
        %v412 = vld [vmem:[%s3 + $0xb8] sm:$0xff]
        %v413 = vsel %vm387, %v386, 0
        %415 = vmatpush.msra.mxu0 %v404
        %416 = vmatpush.msra.mxu0 %v403
        %417 = vmatpush.msra.mxu0 %v402
        %418 = vmatpush.msra.mxu0 %v401
        %419 = vmatpush.msra.mxu0 %v400
        %420 = vmatpush.msra.mxu0 %v399
        %421 = vmatpush.msra.mxu0 %v398
        %422 = vmatpush.msra.mxu0 %v397
        %423 = vmatpush.msra.mxu0 %v396
        %424 = vmatpush.msra.mxu0 %v395
        %425 = vmatpush.msra.mxu0 %v394
        %426 = vmatpush.msra.mxu0 %v393
        %427 = vmatpush.msra.mxu0 %v392
        %428 = vmatpush.msra.mxu0 %v391
        %429 = vmatpush.msra.mxu0 %v390
        %430 = vmatpush.msra.mxu0 %v389
        %431 = vmatmul.f32.gmra.mxu0 %v388
        %v432 = vpop.f32.mrf.mxu0
        %v433 = vadd.f32 0.0, %v432
        %434 = vdwg.mxu0
        %435 = vmatpush.msra.mxu0 0.0
        %436 = vmatpush.msra.mxu0 0.0
        %437 = vmatpush.msra.mxu0 0.0
        %438 = vmatpush.msra.mxu0 0.0
        %439 = vmatpush.msra.mxu0 0.0
        %440 = vmatpush.msra.mxu0 0.0
        %441 = vmatpush.msra.mxu0 0.0
        %442 = vmatpush.msra.mxu0 0.0
        %443 = vmatpush.msra.mxu0 %v412
        %444 = vmatpush.msra.mxu0 %v411
        %445 = vmatpush.msra.mxu0 %v410
        %446 = vmatpush.msra.mxu0 %v409
        %447 = vmatpush.msra.mxu0 %v408
        %448 = vmatpush.msra.mxu0 %v407
        %449 = vmatpush.msra.mxu0 %v406
        %450 = vmatpush.msra.mxu0 %v405
        %451 = vmatmul.f32.gmra.mxu0 %v413
        %v452 = vpop.f32.mrf.mxu0
        %v453 = vadd.f32 %v433, %v452
        %454 = vdwg.mxu0
        %v455 = vadd.f32 %v352, %v453
        %v456 = vld [vmem:[%s4] sm:$0x1]
        %v458 = vperm.slane %v456, 0
        %v460 = vadd.f32 %v455, %v458
        %461 = vst.msk [vmem:[%s315] sm:$0xff] %vm387, %v460
        %s462 = sand.u32 %s179, 1
        %s463 = scalar_lea.sflag [#allocation3], %s462
        %s464 = sand.u32 %s179, 1
        %s465 = smul.addr %s464, 8
        %s466 = scalar_lea.vmem [#allocation2], %s465
        // Predicated region
        $region41: #{tpu_custom_call.1} parent=39 // pred_check
          %p467 = pneg %p189
        $region42: #{tpu_custom_call.1} parent=39 // pred_check_branch
          %469 = sbr.rel (%p467) target = $region44
        $region43: #{tpu_custom_call.1} parent=39 // pred_region
          %471 = vsyncadd %s463, 0
          %s472 = smul.addr %s23, 2
          %s473 = sadd.s32 %s24, %s472
          %s474 = smul.addr %s473, 8
          %s475 = scalar_lea.hbm %s5, %s474
          %s477 = sshll.u32 %s466, 4
          %s478 = int_to_ptr.vmem [resolvable:$true] %s477
          %s479 = sshll.u32 %s475, 4
          %s480 = int_to_ptr.hbm [resolvable:$true] %s479
          %482 = dma.vmem_to_hbm [thread:$0]  %s478, 128, %s480, %s463
        $region44: #{tpu_custom_call.1} parent=39 // pred_fallthru
          _
      $region40: #{tpu_custom_call.1} parent=5 // pred_fallthru
        _
      %p483 = scmp.le.s32.totalorder 2, %s14
      // Predicated region
      $region45: #{tpu_custom_call.1} parent=5 // pred_check
        %p484 = pneg %p483
      $region46: #{tpu_custom_call.1} parent=5 // pred_check_branch
        %486 = sbr.rel (%p484) target = $region48
      $region47: #{tpu_custom_call.1} parent=5 // pred_region
        %s487 = ssub.s32 %s14, 2
        // Predicated region
        $region49: #{tpu_custom_call.1} parent=47 // pred_check
          %p488 = pneg %p195
        $region50: #{tpu_custom_call.1} parent=47 // pred_check_branch
          %490 = sbr.rel (%p488) target = $region52
        $region51: #{tpu_custom_call.1} parent=47 // pred_region
          %s491 = sand.u32 %s180, 1
          %s492 = scalar_lea.sflag [#allocation3], %s491
          %s493 = sand.u32 %s180, 1
          %s494 = smul.addr %s493, 8
          %s495 = scalar_lea.vmem [#allocation2], %s494
          %497 = dma.done %s492, 128
        $region52: #{tpu_custom_call.1} parent=47 // pred_fallthru
          _
      $region48: #{tpu_custom_call.1} parent=5 // pred_fallthru
        _
    $region6: #{tpu_custom_call.1} parent=1 // loop_footer
      %s18 = sadd.s32 1, %s14
    $region7: #{tpu_custom_call.1} parent=1 // loop_footer_branch
      %13 = sbr.rel target = $region3
    $region8: #{tpu_custom_call.1} parent=1 // loop_exit
      _
    %498 = vsyncpa [#allocation3], 1
    %s499 = scalar_lea.sflag [#allocation3], 1
    %500 = vsyncpa %s499, 1

</llo_original>
